<compile_context>
chip_gen: v5e
topology: v5e:2x2
jax: 0.10.0
libtpu: 0.0.40
codegen_flags: <defaults>
</compile_context>

<pallas_src>
import functools

import jax
import jax.numpy as jnp
from jax.experimental import pallas as pl
from jax.experimental.pallas import tpu as pltpu


def _crf_scores_kernel(x_ref, w_rep_ref, const_ref, out_ref):
    """out[m, i*T + j] = (x @ W)[m, j] + b[j] + transition[i, j].

    W_rep already replicates W along lanes (column i*T+j == W[:, j]) and
    const already holds tile(b, T) + transition.flatten(), so the body is a
    single lane-dense MXU matmul with f32 accumulation plus one VPU add.
    """
    out_ref[...] = (
        jnp.dot(x_ref[...], w_rep_ref[...], preferred_element_type=jnp.float32)
        + const_ref[...]
    ).astype(out_ref.dtype)


@functools.partial(jax.jit, static_argnames=("tm",))
def bert_bilstm_crf_forward(emb, w, b, transition, *, tm=512):
    """emb: [B, L, E] BERT output (f32 or bf16); w: [E, T]; b: [T]; transition: [T, T].

    Returns crf_scores: [B, L, T, T] (float32), matching the PyTorch forward.
    """
    B, L, E = emb.shape
    T = transition.shape[0]
    TT = T * T
    rows = B * L

    # Flatten rows; no padding copy (boundary blocks are masked by Pallas).
    x = emb.reshape(rows, E)

    # Pre-replicate weights / constants in the wrapper (tiny one-off work):
    #   w_rep[:, i*T + j] = w[:, j]          -> lane-dense 256-wide MXU output
    #   const[0, i*T + j] = b[j] + transition[i, j]
    w_rep = jnp.tile(w, (1, T))                                            # [E, T*T]
    const = (jnp.tile(b.astype(jnp.float32), T)
             + transition.astype(jnp.float32).reshape(TT)).reshape(1, TT)  # [1, T*T]

    # Row-tile choice: sublane-aligned (multiple of 8); full-extent block when
    # the problem is smaller than one tile (block == full dim is always legal).
    tm = max(8, (int(tm) // 8) * 8)
    tm_eff = rows if rows <= tm else tm
    grid = (pl.cdiv(rows, tm_eff),)

    # Generation-aware VMEM budget: double-buffered x & out tiles + resident
    # weights.  Only raise the scoped limit if we exceed v5e's 16 MiB default;
    # cap below v7x's 64 MiB physical VMEM.
    bytes_x = 2 * tm_eff * E * x.dtype.itemsize
    bytes_out = 2 * tm_eff * TT * 4
    bytes_w = 2 * (E * TT * w_rep.dtype.itemsize + TT * 4)
    vmem_est = bytes_x + bytes_out + bytes_w
    cp_kwargs = dict(dimension_semantics=("parallel",))
    if vmem_est > 14 * 2**20:
        cp_kwargs["vmem_limit_bytes"] = int(min(vmem_est * 3 // 2, 48 * 2**20))

    out_flat = pl.pallas_call(
        _crf_scores_kernel,
        out_shape=jax.ShapeDtypeStruct((rows, TT), jnp.float32),
        grid=grid,
        in_specs=[
            pl.BlockSpec((tm_eff, E), lambda i: (i, 0)),   # activations stream
            pl.BlockSpec((E, TT), lambda i: (0, 0)),       # W_rep: VMEM-resident
            pl.BlockSpec((1, TT), lambda i: (0, 0)),       # b + transition: resident
        ],
        out_specs=pl.BlockSpec((tm_eff, TT), lambda i: (i, 0)),
        compiler_params=pltpu.CompilerParams(**cp_kwargs),
    )(x, w_rep, const)

    return out_flat.reshape(B, L, T, T)


def make_bert_inputs(input_ids):
    """Mirrors the mask construction in forward(); inputs for the external BERT."""
    token_type_ids = jnp.zeros_like(input_ids)
    attention_mask = jnp.where(input_ids > 0, 1, 0).astype(input_ids.dtype)
    return token_type_ids, attention_mask


def _reference_forward(emb, w, b, transition):
    """Pure-JAX reference mirroring the PyTorch forward."""
    emission = (emb.astype(jnp.float32) @ w.astype(jnp.float32)
                + b.astype(jnp.float32))
    return emission[:, :, None, :] + transition.astype(jnp.float32)[None, None, :, :]


if __name__ == "__main__":
    B, L = 2, 8          # batch, sequence length
    E = 128              # BERT hidden size (stand-in for 768)
    T = 16               # out_size (number of tags incl. <start>/<end>/<pad>)

    key = jax.random.PRNGKey(0)
    k_ids, k_emb, k_w, k_b, k_tr = jax.random.split(key, 5)

    # Token ids -> masks (the forward's preprocessing); the BERT encoder itself
    # is external, so a random normal stands in for its output embedding.
    input_ids = jax.random.randint(k_ids, (B, L), 0, 100, dtype=jnp.int32)
    _token_type_ids, _attention_mask = make_bert_inputs(input_ids)
    emb = jax.random.normal(k_emb, (B, L, E), jnp.float32)

    w = 0.02 * jax.random.normal(k_w, (E, T), jnp.float32)      # self.lin.weight.T
    b = 0.02 * jax.random.normal(k_b, (T,), jnp.float32)        # self.lin.bias
    transition = jnp.ones((T, T), jnp.float32) / T               # nn.Parameter init

    crf_scores = bert_bilstm_crf_forward(emb, w, b, transition)
    jax.block_until_ready(crf_scores)

    ref = _reference_forward(emb, w, b, transition)

    assert crf_scores.shape == (B, L, T, T)
    assert jnp.allclose(crf_scores, ref, atol=1e-4, rtol=1e-4)

    print("KERNEL_OK")
</pallas_src>

<mosaic_0001>
module attributes {stable_mosaic.version = 11 : i64} {
  func.func @_crf_scores_kernel(%arg0: i32, %arg1: memref<16x128xf32, #tpu.memory_space<vmem>>, %arg2: memref<128x256xf32, #tpu.memory_space<vmem>>, %arg3: memref<1x256xf32, #tpu.memory_space<vmem>>, %arg4: memref<16x256xf32, #tpu.memory_space<vmem>>) attributes {dimension_semantics = [#tpu.dimension_semantics<parallel>], iteration_bounds = array<i64: 1>, scalar_prefetch = 0 : i64, scratch_operands = 0 : i64, tpu.core_type = #tpu.core_type<tc>, window_params = [{transform_indices = @transform_0, window_bounds = array<i64: 16, 128>}, {pipeline_mode = #tpu.pipeline_mode<synchronous>, transform_indices = @transform_1, window_bounds = array<i64: 128, 256>}, {pipeline_mode = #tpu.pipeline_mode<synchronous>, transform_indices = @transform_2, window_bounds = array<i64: 1, 256>}, {transform_indices = @transform_3, window_bounds = array<i64: 16, 256>}]} {
    %c0 = arith.constant 0 : index
    %c0_0 = arith.constant 0 : index
    %0 = vector.load %arg1[%c0, %c0_0] : memref<16x128xf32, #tpu.memory_space<vmem>>, vector<16x128xf32>
    %c0_1 = arith.constant 0 : index
    %c0_2 = arith.constant 0 : index
    %1 = vector.load %arg2[%c0_1, %c0_2] : memref<128x256xf32, #tpu.memory_space<vmem>>, vector<128x256xf32>
    %cst = arith.constant dense<0.000000e+00> : vector<16x256xf32>
    %2 = tpu.matmul %0, %1, %cst {dimension_numbers = #tpu.dot_dimension_numbers<[1], [0], [0], [1], [0, 0, 1, 1], [], []>} : vector<16x128xf32>, vector<128x256xf32>, vector<16x256xf32> -> vector<16x256xf32>
    %c0_3 = arith.constant 0 : index
    %c0_4 = arith.constant 0 : index
    %3 = vector.load %arg3[%c0_3, %c0_4] : memref<1x256xf32, #tpu.memory_space<vmem>>, vector<1x256xf32>
    %4 = vector.broadcast %3 : vector<1x256xf32> to vector<16x256xf32>
    %5 = arith.addf %2, %4 : vector<16x256xf32>
    %c0_5 = arith.constant 0 : index
    %c0_6 = arith.constant 0 : index
    %6 = vector.load %arg4[%c0_5, %c0_6] : memref<16x256xf32, #tpu.memory_space<vmem>>, vector<16x256xf32>
    tpu.vector_store %arg4[%c0_5, %c0_6], %5 {strides = array<i32>} : memref<16x256xf32, #tpu.memory_space<vmem>>, vector<16x256xf32>,
    return
  }
  func.func @transform_0(%arg0: i32) -> (i32, i32) {
    %c0_i32 = arith.constant 0 : i32
    %c0_i32_0 = arith.constant 0 : i32
    return %arg0, %c0_i32 : i32, i32
  }
  func.func @transform_1(%arg0: i32) -> (i32, i32) {
    %c0_i32 = arith.constant 0 : i32
    %c0_i32_0 = arith.constant 0 : i32
    %c0_i32_1 = arith.constant 0 : i32
    return %c0_i32, %c0_i32_0 : i32, i32
  }
  func.func @transform_2(%arg0: i32) -> (i32, i32) {
    %c0_i32 = arith.constant 0 : i32
    %c0_i32_0 = arith.constant 0 : i32
    %c0_i32_1 = arith.constant 0 : i32
    return %c0_i32, %c0_i32_0 : i32, i32
  }
  func.func @transform_3(%arg0: i32) -> (i32, i32) {
    %c0_i32 = arith.constant 0 : i32
    %c0_i32_0 = arith.constant 0 : i32
    return %arg0, %c0_i32 : i32, i32
  }
}

</mosaic_0001>

<llo_original>
// kernel: bert_bilstm_crf_forward.1
$region0: #{bert_bilstm_crf_forward.1}
  #allocation0 [shape = 'u32[]', space=smem, size = 0x4, offset = 0x4, fixed_abs, tag = 'smem constant byte address 0x4 - core index']
  #allocation1 [shape = 'u32[72,128]{1,0:T(1,128)}', space=vmem, size = 0x9000, scoped, tag = 'internal scratch']
  %s0 = inlined_call_operand.vmem [shape: f32[16,128], index: 0, kind: input, shape index: {}]
  %s1 = inlined_call_operand.vmem [shape: f32[128,256], index: 1, kind: input, shape index: {}]
  %s2 = inlined_call_operand.vmem [shape: f32[1,256], index: 2, kind: input, shape index: {}]
  %s3 = inlined_call_operand.vmem [shape: f32[16,256], index: 3, kind: output, shape index: {}]
  %s4 = sld [smem:[#allocation0]]
  $region22: #{bert_bilstm_crf_forward.1} parent=0
    _
  %s6 = ssub.s32 1, %s4
  %s7 = scalar_select 0, %s6, %s4
  // Predicated region
  $region2: #{bert_bilstm_crf_forward.1} parent=0 // pred_check
    _
  $region3: #{bert_bilstm_crf_forward.1} parent=0 // pred_check_branch
    %9 = sbr.rel (0) target = $region5
  $region4: #{bert_bilstm_crf_forward.1} parent=0 // pred_region
    _
  $region5: #{bert_bilstm_crf_forward.1} parent=0 // pred_fallthru
    _
  // Predicated region
  $region6: #{bert_bilstm_crf_forward.1} parent=0 // pred_check
    _
  $region7: #{bert_bilstm_crf_forward.1} parent=0 // pred_check_branch
    %11 = sbr.rel (0) target = $region9
  $region8: #{bert_bilstm_crf_forward.1} parent=0 // pred_region
    _
  $region9: #{bert_bilstm_crf_forward.1} parent=0 // pred_fallthru
    _
  // Predicated region
  $region10: #{bert_bilstm_crf_forward.1} parent=0 // pred_check
    _
  $region11: #{bert_bilstm_crf_forward.1} parent=0 // pred_check_branch
    %13 = sbr.rel (0) target = $region13
  $region12: #{bert_bilstm_crf_forward.1} parent=0 // pred_region
    _
  $region13: #{bert_bilstm_crf_forward.1} parent=0 // pred_fallthru
    _
  %v14 = vld [vmem:[%s0] sm:$0xff]
  %v15 = vld [vmem:[%s0 + $0x8] sm:$0xff]
  %v16 = vld [vmem:[%s1] sm:$0xff]
  %v17 = vld [vmem:[%s1 + $0x8] sm:$0xff]
  %v18 = vld [vmem:[%s1 + $0x10] sm:$0xff]
  %v19 = vld [vmem:[%s1 + $0x18] sm:$0xff]
  %v20 = vld [vmem:[%s1 + $0x20] sm:$0xff]
  %v21 = vld [vmem:[%s1 + $0x28] sm:$0xff]
  %v22 = vld [vmem:[%s1 + $0x30] sm:$0xff]
  %v23 = vld [vmem:[%s1 + $0x38] sm:$0xff]
  %v24 = vld [vmem:[%s1 + $0x40] sm:$0xff]
  %v25 = vld [vmem:[%s1 + $0x48] sm:$0xff]
  %v26 = vld [vmem:[%s1 + $0x50] sm:$0xff]
  %v27 = vld [vmem:[%s1 + $0x58] sm:$0xff]
  %v28 = vld [vmem:[%s1 + $0x60] sm:$0xff]
  %v29 = vld [vmem:[%s1 + $0x68] sm:$0xff]
  %v30 = vld [vmem:[%s1 + $0x70] sm:$0xff]
  %v31 = vld [vmem:[%s1 + $0x78] sm:$0xff]
  %v32 = vld [vmem:[%s1 + $0x80] sm:$0xff]
  %v33 = vld [vmem:[%s1 + $0x88] sm:$0xff]
  %v34 = vld [vmem:[%s1 + $0x90] sm:$0xff]
  %v35 = vld [vmem:[%s1 + $0x98] sm:$0xff]
  %v36 = vld [vmem:[%s1 + $0xa0] sm:$0xff]
  %v37 = vld [vmem:[%s1 + $0xa8] sm:$0xff]
  %v38 = vld [vmem:[%s1 + $0xb0] sm:$0xff]
  %v39 = vld [vmem:[%s1 + $0xb8] sm:$0xff]
  %v40 = vld [vmem:[%s1 + $0xc0] sm:$0xff]
  %v41 = vld [vmem:[%s1 + $0xc8] sm:$0xff]
  %v42 = vld [vmem:[%s1 + $0xd0] sm:$0xff]
  %v43 = vld [vmem:[%s1 + $0xd8] sm:$0xff]
  %v44 = vld [vmem:[%s1 + $0xe0] sm:$0xff]
  %v45 = vld [vmem:[%s1 + $0xe8] sm:$0xff]
  %v46 = vld [vmem:[%s1 + $0xf0] sm:$0xff]
  %v47 = vld [vmem:[%s1 + $0xf8] sm:$0xff]
  %v48 = vld [vmem:[%s2] sm:$0x3]
  %v50 = vperm.slane %v48, 0
  %v51 = vperm.slane %v48, 1
  %54 = vmatpush.msra.mxu0 %v46
  %55 = vmatpush.msra.mxu0 %v44
  %56 = vmatpush.msra.mxu0 %v42
  %57 = vmatpush.msra.mxu0 %v40
  %58 = vmatpush.msra.mxu0 %v38
  %59 = vmatpush.msra.mxu0 %v36
  %60 = vmatpush.msra.mxu0 %v34
  %61 = vmatpush.msra.mxu0 %v32
  %62 = vmatpush.msra.mxu0 %v30
  %63 = vmatpush.msra.mxu0 %v28
  %64 = vmatpush.msra.mxu0 %v26
  %65 = vmatpush.msra.mxu0 %v24
  %66 = vmatpush.msra.mxu0 %v22
  %67 = vmatpush.msra.mxu0 %v20
  %68 = vmatpush.msra.mxu0 %v18
  %69 = vmatpush.msra.mxu0 %v16
  %70 = vmatmul.f32.gmra.mxu0 %v14
  %v71 = vpop.f32.mrf.mxu0
  %v72 = vadd.f32 %v50, %v71
  %73 = vmatmul.f32.gmra.mxu0 %v15
  %v74 = vpop.f32.mrf.mxu0
  %v75 = vadd.f32 %v50, %v74
  %76 = vdwg.mxu0
  %77 = vmatpush.msra.mxu0 %v47
  %78 = vmatpush.msra.mxu0 %v45
  %79 = vmatpush.msra.mxu0 %v43
  %80 = vmatpush.msra.mxu0 %v41
  %81 = vmatpush.msra.mxu0 %v39
  %82 = vmatpush.msra.mxu0 %v37
  %83 = vmatpush.msra.mxu0 %v35
  %84 = vmatpush.msra.mxu0 %v33
  %85 = vmatpush.msra.mxu0 %v31
  %86 = vmatpush.msra.mxu0 %v29
  %87 = vmatpush.msra.mxu0 %v27
  %88 = vmatpush.msra.mxu0 %v25
  %89 = vmatpush.msra.mxu0 %v23
  %90 = vmatpush.msra.mxu0 %v21
  %91 = vmatpush.msra.mxu0 %v19
  %92 = vmatpush.msra.mxu0 %v17
  %93 = vmatmul.f32.gmra.mxu0 %v14
  %v94 = vpop.f32.mrf.mxu0
  %v95 = vadd.f32 %v51, %v94
  %96 = vmatmul.f32.gmra.mxu0 %v15
  %v97 = vpop.f32.mrf.mxu0
  %v98 = vadd.f32 %v51, %v97
  %99 = vdwg.mxu0
  %100 = vst [vmem:[%s3] sm:$0xff] %v72
  %101 = vst [vmem:[%s3 + $0x8] sm:$0xff] %v95
  %102 = vst [vmem:[%s3 + $0x10] sm:$0xff] %v75
  %103 = vst [vmem:[%s3 + $0x18] sm:$0xff] %v98
  // Predicated region
  $region14: #{bert_bilstm_crf_forward.1} parent=0 // pred_check
    _
  $region15: #{bert_bilstm_crf_forward.1} parent=0 // pred_check_branch
    %105 = sbr.rel (0) target = $region17
  $region16: #{bert_bilstm_crf_forward.1} parent=0 // pred_region
    _
  $region17: #{bert_bilstm_crf_forward.1} parent=0 // pred_fallthru
    _
  // Predicated region
  $region18: #{bert_bilstm_crf_forward.1} parent=0 // pred_check
    _
  $region19: #{bert_bilstm_crf_forward.1} parent=0 // pred_check_branch
    %107 = sbr.rel (0) target = $region21
  $region20: #{bert_bilstm_crf_forward.1} parent=0 // pred_region
    _
  $region21: #{bert_bilstm_crf_forward.1} parent=0 // pred_fallthru
    _

</llo_original>
